<compile_context>
chip_gen: v5e
topology: v5e:2x2
jax: 0.10.0
libtpu: 0.0.40
codegen_flags: <defaults>
</compile_context>

<pallas_src>
import functools
import math

import jax
import jax.numpy as jnp
from jax.experimental import pallas as pl
from jax.experimental.pallas import tpu as pltpu


def _att_mha_add_kernel(enc_ref, dec_ref, lens_ref,
                        wq_ref, bq_ref, wk_ref, wv_ref, wg_ref, bg_ref, wo_ref,
                        c_ref, w_ref, *, scaling, H, K, V):
    B, T, E = enc_ref.shape
    f32 = jnp.float32
    mm_dtype = wk_ref.dtype          # f32 or bf16 (set by the wrapper)

    # ---- batched projections: heads folded on the lane axis, one dot each ----
    enc2d = enc_ref[...].reshape(B * T, E).astype(mm_dtype)              # (B*T, E)
    k3 = jnp.dot(enc2d, wk_ref[...],
                 preferred_element_type=f32).reshape(B, T, H * K)        # (B, T, H*K)
    v3 = jnp.dot(enc2d, wv_ref[...],
                 preferred_element_type=f32).reshape(B, T, H * V)        # (B, T, H*V)
    q = jnp.dot(dec_ref[...].astype(mm_dtype), wq_ref[...],
                preferred_element_type=f32) + bq_ref[...]                # (B, H*K)

    # ---- additive-attention gate for all heads at once (VPU, f32) ----
    s = jnp.tanh(k3 + q[:, None, :])                                     # (B, T, H*K)
    g = s * wg_ref[...][None, :, :]                                      # (B, T, H*K)

    # ---- padding mask, built once: True where t >= enc_hs_len[b] ----
    t_idx = jax.lax.broadcasted_iota(jnp.int32, (B, T), 1)
    pad = t_idx >= lens_ref[...]                                         # (B, T)
    neg = jnp.float32(-1e30)

    ctx_parts = []
    for h in range(H):                               # H is small and static
        # gate reduction over this head's K lanes (VPU mul above + XLU reduce)
        e_h = jnp.sum(g[:, :, h * K:(h + 1) * K], axis=-1) + bg_ref[h]   # (B, T)
        logits = scaling * jnp.where(pad, neg, e_h)
        m = jnp.max(logits, axis=-1, keepdims=True)                      # (B, 1)
        p = jnp.exp(logits - m)
        denom = jnp.sum(p, axis=-1, keepdims=True)
        w_h = p * pl.reciprocal(denom, approx=True)                      # (B, T)

        w_ref[h] = w_h                         # lane-dense full-slice store

        v_h = v3[:, :, h * V:(h + 1) * V]                                # (B, T, V)
        ctx_parts.append(jnp.sum(v_h * w_h[:, :, None], axis=1))         # (B, V)

    # ---- single output projection for all heads: (B, H*V) @ (H*V, E) ----
    ctx = jnp.concatenate(ctx_parts, axis=-1)                            # (B, H*V)
    c_ref[...] = jnp.dot(ctx.astype(wo_ref.dtype), wo_ref[...],
                         preferred_element_type=f32)                     # (B, E)


def _fold_params(params, matmul_dtype):
    """Concatenate per-head weights along the lane (output-feature) axis."""
    H, D, K = params["wq"].shape
    E = params["wk"].shape[1]
    V = params["wv"].shape[2]
    return {
        "wq": jnp.transpose(params["wq"], (1, 0, 2)).reshape(D, H * K).astype(matmul_dtype),
        "bq": params["bq"].reshape(1, H * K).astype(jnp.float32),
        "wk": jnp.transpose(params["wk"], (1, 0, 2)).reshape(E, H * K).astype(matmul_dtype),
        "wv": jnp.transpose(params["wv"], (1, 0, 2)).reshape(E, H * V).astype(matmul_dtype),
        "wg": params["wg"].reshape(1, H * K).astype(jnp.float32),
        "bg": params["bg"].reshape(H).astype(jnp.float32),
        "wo": params["wo"].reshape(H * V, E).astype(matmul_dtype),
    }


def att_multi_head_add(enc_hs_pad, enc_hs_len, dec_z, params, *,
                       matmul_dtype=jnp.float32):
    """Pallas implementation of AttMultiHeadAdd.forward (att_prev is unused)."""
    B, T, E = enc_hs_pad.shape
    H, D, K = params["wq"].shape
    V = params["wv"].shape[2]
    scaling = 1.0 / math.sqrt(K)

    p = _fold_params(params, matmul_dtype)
    lens2d = jnp.asarray(enc_hs_len, jnp.int32).reshape(B, 1)

    kernel = functools.partial(_att_mha_add_kernel,
                               scaling=scaling, H=H, K=K, V=V)

    c, w_hbt = pl.pallas_call(
        kernel,
        grid=(1,),
        in_specs=[
            pl.BlockSpec((B, T, E), lambda i: (0, 0, 0)),           # enc
            pl.BlockSpec((B, D), lambda i: (0, 0)),                 # dec_z
            pl.BlockSpec((B, 1), lambda i: (0, 0)),                 # lens (int32)
            pl.BlockSpec((D, H * K), lambda i: (0, 0)),             # Wq  (folded)
            pl.BlockSpec((1, H * K), lambda i: (0, 0)),             # bq
            pl.BlockSpec((E, H * K), lambda i: (0, 0)),             # Wk  (folded)
            pl.BlockSpec((E, H * V), lambda i: (0, 0)),             # Wv  (folded)
            pl.BlockSpec((1, H * K), lambda i: (0, 0)),             # wg  (flattened)
            pl.BlockSpec(memory_space=pltpu.MemorySpace.SMEM),      # bg  (H,) scalars
            pl.BlockSpec((H * V, E), lambda i: (0, 0)),             # Wo  (full)
        ],
        out_specs=[
            pl.BlockSpec((B, E), lambda i: (0, 0)),                 # c
            pl.BlockSpec((H, B, T), lambda i: (0, 0, 0)),           # w (lane-dense)
        ],
        out_shape=(
            jax.ShapeDtypeStruct((B, E), jnp.float32),
            jax.ShapeDtypeStruct((H, B, T), jnp.float32),
        ),
        compiler_params=pltpu.CompilerParams(
            dimension_semantics=("arbitrary",)),
    )(enc_hs_pad.astype(jnp.float32), dec_z.astype(jnp.float32), lens2d,
      p["wq"], p["bq"], p["wk"], p["wv"], p["wg"], p["bg"], p["wo"])

    return c, [w_hbt[h] for h in range(H)]


def reference_jax(enc, lens, dec, params):
    """Pure-JAX reference reproducing the PyTorch forward."""
    B, T, E = enc.shape
    H, D, K = params["wq"].shape
    V = params["wv"].shape[2]
    scaling = 1.0 / math.sqrt(K)
    cs, ws = [], []
    mask = jnp.arange(T)[None, :] >= lens[:, None]
    for h in range(H):
        k = jnp.einsum("bte,ek->btk", enc, params["wk"][h])
        v = jnp.einsum("bte,ev->btv", enc, params["wv"][h])
        q = dec @ params["wq"][h] + params["bq"][h]               # (B, K)
        e = jnp.squeeze(jnp.tanh(k + q[:, None, :]) @ params["wg"][h], -1)
        e = e + params["bg"][h][0, 0]
        e = jnp.where(mask, -jnp.inf, e)
        w = jax.nn.softmax(scaling * e, axis=1)
        ws.append(w)
        cs.append(jnp.sum(v * w[:, :, None], axis=1))
    wo_full = params["wo"].reshape(H * V, E)
    c = jnp.concatenate(cs, axis=1) @ wo_full
    return c, ws


if __name__ == "__main__":
    # Small shapes consistent with the module.
    B, T = 2, 8
    eprojs, dunits, aheads, att_dim_k, att_dim_v = 16, 32, 2, 16, 8

    key = jax.random.PRNGKey(0)
    ks = jax.random.split(key, 10)

    enc_hs_pad = jax.random.normal(ks[0], (B, T, eprojs), dtype=jnp.float32)
    dec_z = jax.random.normal(ks[1], (B, dunits), dtype=jnp.float32)
    enc_hs_len = jnp.array([T, T - 3], dtype=jnp.int32)

    params = {
        "wq": 0.1 * jax.random.normal(ks[2], (aheads, dunits, att_dim_k), jnp.float32),
        "bq": 0.1 * jax.random.normal(ks[3], (aheads, 1, att_dim_k), jnp.float32),
        "wk": 0.1 * jax.random.normal(ks[4], (aheads, eprojs, att_dim_k), jnp.float32),
        "wv": 0.1 * jax.random.normal(ks[5], (aheads, eprojs, att_dim_v), jnp.float32),
        "wg": 0.1 * jax.random.normal(ks[6], (aheads, att_dim_k, 1), jnp.float32),
        "bg": 0.1 * jax.random.normal(ks[7], (aheads, 1, 1), jnp.float32),
        "wo": 0.1 * jax.random.normal(ks[8], (aheads, att_dim_v, eprojs), jnp.float32),
    }

    c_ref, w_refs = reference_jax(enc_hs_pad, enc_hs_len, dec_z, params)

    # f32 MXU path (approx EUP reciprocal in the softmax -> ~1e-4-level error).
    c, w_list = att_multi_head_add(enc_hs_pad, enc_hs_len, dec_z, params)
    c = jax.block_until_ready(c)
    w_list = [jax.block_until_ready(w) for w in w_list]
    assert jnp.allclose(c, c_ref, atol=2e-3, rtol=2e-3), "context mismatch (f32)"
    for h in range(aheads):
        assert jnp.allclose(w_list[h], w_refs[h], atol=2e-3, rtol=2e-3), \
            f"weights mismatch head {h} (f32)"

    # bf16 MXU path (perf feedback): weights fed to the MXU in bf16 with f32
    # accumulation; tanh / softmax remain f32.  Looser tolerance accordingly.
    c16, w16 = att_multi_head_add(enc_hs_pad, enc_hs_len, dec_z, params,
                                  matmul_dtype=jnp.bfloat16)
    c16 = jax.block_until_ready(c16)
    w16 = [jax.block_until_ready(w) for w in w16]
    assert jnp.allclose(c16, c_ref, atol=3e-2, rtol=3e-2), "context mismatch (bf16)"
    for h in range(aheads):
        assert jnp.allclose(w16[h], w_refs[h], atol=3e-2, rtol=3e-2), \
            f"weights mismatch head {h} (bf16)"

    print("KERNEL_OK")
</pallas_src>

<mosaic_0001>
module attributes {stable_mosaic.version = 11 : i64} {
  func.func @_att_mha_add_kernel(%arg0: i32, %arg1: memref<2x8x16xf32, #tpu.memory_space<vmem>>, %arg2: memref<2x32xf32, #tpu.memory_space<vmem>>, %arg3: memref<2x1xi32, #tpu.memory_space<vmem>>, %arg4: memref<32x32xf32, #tpu.memory_space<vmem>>, %arg5: memref<1x32xf32, #tpu.memory_space<vmem>>, %arg6: memref<16x32xf32, #tpu.memory_space<vmem>>, %arg7: memref<16x16xf32, #tpu.memory_space<vmem>>, %arg8: memref<1x32xf32, #tpu.memory_space<vmem>>, %arg9: memref<2xf32, #tpu.memory_space<smem>>, %arg10: memref<16x16xf32, #tpu.memory_space<vmem>>, %arg11: memref<2x16xf32, #tpu.memory_space<vmem>>, %arg12: memref<2x2x8xf32, #tpu.memory_space<vmem>>) attributes {dimension_semantics = [#tpu.dimension_semantics<arbitrary>], iteration_bounds = array<i64: 1>, scalar_prefetch = 0 : i64, scratch_operands = 0 : i64, tpu.core_type = #tpu.core_type<tc>, window_params = [{pipeline_mode = #tpu.pipeline_mode<synchronous>, transform_indices = @transform_0, window_bounds = array<i64: 2, 8, 16>}, {pipeline_mode = #tpu.pipeline_mode<synchronous>, transform_indices = @transform_1, window_bounds = array<i64: 2, 32>}, {pipeline_mode = #tpu.pipeline_mode<synchronous>, transform_indices = @transform_2, window_bounds = array<i64: 2, 1>}, {pipeline_mode = #tpu.pipeline_mode<synchronous>, transform_indices = @transform_3, window_bounds = array<i64: 32, 32>}, {pipeline_mode = #tpu.pipeline_mode<synchronous>, transform_indices = @transform_4, window_bounds = array<i64: 1, 32>}, {pipeline_mode = #tpu.pipeline_mode<synchronous>, transform_indices = @transform_5, window_bounds = array<i64: 16, 32>}, {pipeline_mode = #tpu.pipeline_mode<synchronous>, transform_indices = @transform_6, window_bounds = array<i64: 16, 16>}, {pipeline_mode = #tpu.pipeline_mode<synchronous>, transform_indices = @transform_7, window_bounds = array<i64: 1, 32>}, {transform_indices = @transform_8, window_bounds = array<i64: 2>}, {pipeline_mode = #tpu.pipeline_mode<synchronous>, transform_indices = @transform_9, window_bounds = array<i64: 16, 16>}, {pipeline_mode = #tpu.pipeline_mode<synchronous>, transform_indices = @transform_10, window_bounds = array<i64: 2, 16>}, {pipeline_mode = #tpu.pipeline_mode<synchronous>, transform_indices = @transform_11, window_bounds = array<i64: 2, 2, 8>}]} {
    %c0 = arith.constant 0 : index
    %c0_0 = arith.constant 0 : index
    %c0_1 = arith.constant 0 : index
    %0 = vector.load %arg1[%c0, %c0_0, %c0_1] : memref<2x8x16xf32, #tpu.memory_space<vmem>>, vector<2x8x16xf32>
    %1 = vector.shape_cast %0 : vector<2x8x16xf32> to vector<16x16xf32>
    %c0_2 = arith.constant 0 : index
    %c0_3 = arith.constant 0 : index
    %2 = vector.load %arg6[%c0_2, %c0_3] : memref<16x32xf32, #tpu.memory_space<vmem>>, vector<16x32xf32>
    %cst = arith.constant dense<0.000000e+00> : vector<16x32xf32>
    %3 = tpu.matmul %1, %2, %cst {dimension_numbers = #tpu.dot_dimension_numbers<[1], [0], [0], [1], [0, 0, 1, 1], [], []>} : vector<16x16xf32>, vector<16x32xf32>, vector<16x32xf32> -> vector<16x32xf32>
    %4 = vector.shape_cast %3 : vector<16x32xf32> to vector<2x8x32xf32>
    %c0_4 = arith.constant 0 : index
    %c0_5 = arith.constant 0 : index
    %5 = vector.load %arg7[%c0_4, %c0_5] : memref<16x16xf32, #tpu.memory_space<vmem>>, vector<16x16xf32>
    %cst_6 = arith.constant dense<0.000000e+00> : vector<16x16xf32>
    %6 = tpu.matmul %1, %5, %cst_6 {dimension_numbers = #tpu.dot_dimension_numbers<[1], [0], [0], [1], [0, 0, 1, 1], [], []>} : vector<16x16xf32>, vector<16x16xf32>, vector<16x16xf32> -> vector<16x16xf32>
    %7 = vector.shape_cast %6 : vector<16x16xf32> to vector<2x8x16xf32>
    %c0_7 = arith.constant 0 : index
    %c0_8 = arith.constant 0 : index
    %8 = vector.load %arg2[%c0_7, %c0_8] : memref<2x32xf32, #tpu.memory_space<vmem>>, vector<2x32xf32>
    %c0_9 = arith.constant 0 : index
    %c0_10 = arith.constant 0 : index
    %9 = vector.load %arg4[%c0_9, %c0_10] : memref<32x32xf32, #tpu.memory_space<vmem>>, vector<32x32xf32>
    %cst_11 = arith.constant dense<0.000000e+00> : vector<2x32xf32>
    %10 = tpu.matmul %8, %9, %cst_11 {dimension_numbers = #tpu.dot_dimension_numbers<[1], [0], [0], [1], [0, 0, 1, 1], [], []>} : vector<2x32xf32>, vector<32x32xf32>, vector<2x32xf32> -> vector<2x32xf32>
    %c0_12 = arith.constant 0 : index
    %c0_13 = arith.constant 0 : index
    %11 = vector.load %arg5[%c0_12, %c0_13] : memref<1x32xf32, #tpu.memory_space<vmem>>, vector<1x32xf32>
    %12 = vector.broadcast %11 : vector<1x32xf32> to vector<2x32xf32>
    %13 = arith.addf %10, %12 : vector<2x32xf32>
    %14 = vector.shape_cast %13 : vector<2x32xf32> to vector<2x1x32xf32>
    %15 = vector.broadcast %14 : vector<2x1x32xf32> to vector<2x8x32xf32>
    %16 = arith.addf %4, %15 : vector<2x8x32xf32>
    %17 = math.tanh %16 : vector<2x8x32xf32>
    %c0_14 = arith.constant 0 : index
    %c0_15 = arith.constant 0 : index
    %18 = vector.load %arg8[%c0_14, %c0_15] : memref<1x32xf32, #tpu.memory_space<vmem>>, vector<1x32xf32>
    %19 = vector.shape_cast %18 : vector<1x32xf32> to vector<1x1x32xf32>
    %20 = vector.broadcast %19 : vector<1x1x32xf32> to vector<2x8x32xf32>
    %21 = arith.mulf %17, %20 : vector<2x8x32xf32>
    %22 = tpu.iota {dimensions = array<i32: 1>} : vector<2x8xi32>
    %c0_16 = arith.constant 0 : index
    %c0_17 = arith.constant 0 : index
    %23 = vector.load %arg3[%c0_16, %c0_17] : memref<2x1xi32, #tpu.memory_space<vmem>>, vector<2x1xi32>
    %24 = vector.broadcast %23 : vector<2x1xi32> to vector<2x8xi32>
    %25 = arith.cmpi sge, %22, %24 : vector<2x8xi32>
    %26 = vector.extract_strided_slice %21 {offsets = [0, 0, 0], sizes = [2, 8, 16], strides = [1, 1, 1]} : vector<2x8x32xf32> to vector<2x8x16xf32>
    %cst_18 = arith.constant dense<0.000000e+00> : vector<2x8xf32>
    %27 = vector.multi_reduction <add>, %26, %cst_18 [2] : vector<2x8x16xf32> to vector<2x8xf32>
    %c0_19 = arith.constant 0 : index
    %28 = memref.load %arg9[%c0_19] : memref<2xf32, #tpu.memory_space<smem>>
    %29 = vector.broadcast %28 : f32 to vector<2x8xf32>
    %30 = arith.addf %27, %29 : vector<2x8xf32>
    %cst_20 = arith.constant -1.000000e+30 : f32
    %31 = vector.broadcast %cst_20 : f32 to vector<2x8xf32>
    %32 = arith.select %25, %31, %30 : vector<2x8xi1>, vector<2x8xf32>
    %cst_21 = arith.constant 2.500000e-01 : f32
    %33 = vector.broadcast %cst_21 : f32 to vector<2x8xf32>
    %34 = arith.mulf %33, %32 : vector<2x8xf32>
    %cst_22 = arith.constant dense<0xFF800000> : vector<2xf32>
    %35 = vector.multi_reduction <maximumf>, %34, %cst_22 [1] : vector<2x8xf32> to vector<2xf32>
    %36 = vector.shape_cast %35 : vector<2xf32> to vector<2x1xf32>
    %37 = vector.broadcast %36 : vector<2x1xf32> to vector<2x8xf32>
    %38 = arith.subf %34, %37 : vector<2x8xf32>
    %39 = math.exp %38 : vector<2x8xf32>
    %cst_23 = arith.constant dense<0.000000e+00> : vector<2xf32>
    %40 = vector.multi_reduction <add>, %39, %cst_23 [1] : vector<2x8xf32> to vector<2xf32>
    %41 = vector.shape_cast %40 : vector<2xf32> to vector<2x1xf32>
    %42 = tpu.reciprocal %41 {approx = true} : vector<2x1xf32> -> vector<2x1xf32>
    %43 = vector.broadcast %42 : vector<2x1xf32> to vector<2x8xf32>
    %44 = arith.mulf %39, %43 : vector<2x8xf32>
    %c0_24 = arith.constant 0 : index
    %c0_25 = arith.constant 0 : index
    %c0_26 = arith.constant 0 : index
    %45 = vector.load %arg12[%c0_24, %c0_25, %c0_26] : memref<2x2x8xf32, #tpu.memory_space<vmem>>, vector<1x2x8xf32>
    %46 = vector.shape_cast %45 : vector<1x2x8xf32> to vector<2x8xf32>
    %47 = vector.shape_cast %44 : vector<2x8xf32> to vector<1x2x8xf32>
    tpu.vector_store %arg12[%c0_24, %c0_25, %c0_26], %47 {strides = array<i32>} : memref<2x2x8xf32, #tpu.memory_space<vmem>>, vector<1x2x8xf32>,
    %48 = vector.extract_strided_slice %7 {offsets = [0, 0, 0], sizes = [2, 8, 8], strides = [1, 1, 1]} : vector<2x8x16xf32> to vector<2x8x8xf32>
    %49 = vector.shape_cast %44 : vector<2x8xf32> to vector<2x8x1xf32>
    %50 = vector.broadcast %49 : vector<2x8x1xf32> to vector<2x8x8xf32>
    %51 = arith.mulf %48, %50 : vector<2x8x8xf32>
    %cst_27 = arith.constant dense<0.000000e+00> : vector<2x8xf32>
    %52 = vector.multi_reduction <add>, %51, %cst_27 [1] : vector<2x8x8xf32> to vector<2x8xf32>
    %53 = vector.extract_strided_slice %21 {offsets = [0, 0, 16], sizes = [2, 8, 16], strides = [1, 1, 1]} : vector<2x8x32xf32> to vector<2x8x16xf32>
    %cst_28 = arith.constant dense<0.000000e+00> : vector<2x8xf32>
    %54 = vector.multi_reduction <add>, %53, %cst_28 [2] : vector<2x8x16xf32> to vector<2x8xf32>
    %c1 = arith.constant 1 : index
    %55 = memref.load %arg9[%c1] : memref<2xf32, #tpu.memory_space<smem>>
    %56 = vector.broadcast %55 : f32 to vector<2x8xf32>
    %57 = arith.addf %54, %56 : vector<2x8xf32>
    %cst_29 = arith.constant -1.000000e+30 : f32
    %58 = vector.broadcast %cst_29 : f32 to vector<2x8xf32>
    %59 = arith.select %25, %58, %57 : vector<2x8xi1>, vector<2x8xf32>
    %cst_30 = arith.constant 2.500000e-01 : f32
    %60 = vector.broadcast %cst_30 : f32 to vector<2x8xf32>
    %61 = arith.mulf %60, %59 : vector<2x8xf32>
    %cst_31 = arith.constant dense<0xFF800000> : vector<2xf32>
    %62 = vector.multi_reduction <maximumf>, %61, %cst_31 [1] : vector<2x8xf32> to vector<2xf32>
    %63 = vector.shape_cast %62 : vector<2xf32> to vector<2x1xf32>
    %64 = vector.broadcast %63 : vector<2x1xf32> to vector<2x8xf32>
    %65 = arith.subf %61, %64 : vector<2x8xf32>
    %66 = math.exp %65 : vector<2x8xf32>
    %cst_32 = arith.constant dense<0.000000e+00> : vector<2xf32>
    %67 = vector.multi_reduction <add>, %66, %cst_32 [1] : vector<2x8xf32> to vector<2xf32>
    %68 = vector.shape_cast %67 : vector<2xf32> to vector<2x1xf32>
    %69 = tpu.reciprocal %68 {approx = true} : vector<2x1xf32> -> vector<2x1xf32>
    %70 = vector.broadcast %69 : vector<2x1xf32> to vector<2x8xf32>
    %71 = arith.mulf %66, %70 : vector<2x8xf32>
    %c1_33 = arith.constant 1 : index
    %c0_34 = arith.constant 0 : index
    %c0_35 = arith.constant 0 : index
    %72 = vector.load %arg12[%c1_33, %c0_34, %c0_35] : memref<2x2x8xf32, #tpu.memory_space<vmem>>, vector<1x2x8xf32>
    %73 = vector.shape_cast %72 : vector<1x2x8xf32> to vector<2x8xf32>
    %74 = vector.shape_cast %71 : vector<2x8xf32> to vector<1x2x8xf32>
    tpu.vector_store %arg12[%c1_33, %c0_34, %c0_35], %74 {strides = array<i32>} : memref<2x2x8xf32, #tpu.memory_space<vmem>>, vector<1x2x8xf32>,
    %75 = vector.extract_strided_slice %7 {offsets = [0, 0, 8], sizes = [2, 8, 8], strides = [1, 1, 1]} : vector<2x8x16xf32> to vector<2x8x8xf32>
    %76 = vector.shape_cast %71 : vector<2x8xf32> to vector<2x8x1xf32>
    %77 = vector.broadcast %76 : vector<2x8x1xf32> to vector<2x8x8xf32>
    %78 = arith.mulf %75, %77 : vector<2x8x8xf32>
    %cst_36 = arith.constant dense<0.000000e+00> : vector<2x8xf32>
    %79 = vector.multi_reduction <add>, %78, %cst_36 [1] : vector<2x8x8xf32> to vector<2x8xf32>
    %80 = tpu.concatenate %52, %79 in 1 : vector<2x8xf32>, vector<2x8xf32> -> vector<2x16xf32>
    %c0_37 = arith.constant 0 : index
    %c0_38 = arith.constant 0 : index
    %81 = vector.load %arg10[%c0_37, %c0_38] : memref<16x16xf32, #tpu.memory_space<vmem>>, vector<16x16xf32>
    %cst_39 = arith.constant dense<0.000000e+00> : vector<2x16xf32>
    %82 = tpu.matmul %80, %81, %cst_39 {dimension_numbers = #tpu.dot_dimension_numbers<[1], [0], [0], [1], [0, 0, 1, 1], [], []>} : vector<2x16xf32>, vector<16x16xf32>, vector<2x16xf32> -> vector<2x16xf32>
    %c0_40 = arith.constant 0 : index
    %c0_41 = arith.constant 0 : index
    %83 = vector.load %arg11[%c0_40, %c0_41] : memref<2x16xf32, #tpu.memory_space<vmem>>, vector<2x16xf32>
    tpu.vector_store %arg11[%c0_40, %c0_41], %82 {strides = array<i32>} : memref<2x16xf32, #tpu.memory_space<vmem>>, vector<2x16xf32>,
    return
  }
  func.func @transform_0(%arg0: i32) -> (i32, i32, i32) {
    %c0_i32 = arith.constant 0 : i32
    %c0_i32_0 = arith.constant 0 : i32
    %c0_i32_1 = arith.constant 0 : i32
    %c0_i32_2 = arith.constant 0 : i32
    return %c0_i32, %c0_i32_0, %c0_i32_1 : i32, i32, i32
  }
  func.func @transform_1(%arg0: i32) -> (i32, i32) {
    %c0_i32 = arith.constant 0 : i32
    %c0_i32_0 = arith.constant 0 : i32
    %c0_i32_1 = arith.constant 0 : i32
    return %c0_i32, %c0_i32_0 : i32, i32
  }
  func.func @transform_2(%arg0: i32) -> (i32, i32) {
    %c0_i32 = arith.constant 0 : i32
    %c0_i32_0 = arith.constant 0 : i32
    %c0_i32_1 = arith.constant 0 : i32
    return %c0_i32, %c0_i32_0 : i32, i32
  }
  func.func @transform_3(%arg0: i32) -> (i32, i32) {
    %c0_i32 = arith.constant 0 : i32
    %c0_i32_0 = arith.constant 0 : i32
    %c0_i32_1 = arith.constant 0 : i32
    return %c0_i32, %c0_i32_0 : i32, i32
  }
  func.func @transform_4(%arg0: i32) -> (i32, i32) {
    %c0_i32 = arith.constant 0 : i32
    %c0_i32_0 = arith.constant 0 : i32
    %c0_i32_1 = arith.constant 0 : i32
    return %c0_i32, %c0_i32_0 : i32, i32
  }
  func.func @transform_5(%arg0: i32) -> (i32, i32) {
    %c0_i32 = arith.constant 0 : i32
    %c0_i32_0 = arith.constant 0 : i32
    %c0_i32_1 = arith.constant 0 : i32
    return %c0_i32, %c0_i32_0 : i32, i32
  }
  func.func @transform_6(%arg0: i32) -> (i32, i32) {
    %c0_i32 = arith.constant 0 : i32
    %c0_i32_0 = arith.constant 0 : i32
    %c0_i32_1 = arith.constant 0 : i32
    return %c0_i32, %c0_i32_0 : i32, i32
  }
  func.func @transform_7(%arg0: i32) -> (i32, i32) {
    %c0_i32 = arith.constant 0 : i32
    %c0_i32_0 = arith.constant 0 : i32
    %c0_i32_1 = arith.constant 0 : i32
    return %c0_i32, %c0_i32_0 : i32, i32
  }
  func.func @transform_8(%arg0: i32) -> i32 {
    %c0_i32 = arith.constant 0 : i32
    %c0_i32_0 = arith.constant 0 : i32
    return %c0_i32 : i32
  }
  func.func @transform_9(%arg0: i32) -> (i32, i32) {
    %c0_i32 = arith.constant 0 : i32
    %c0_i32_0 = arith.constant 0 : i32
    %c0_i32_1 = arith.constant 0 : i32
    return %c0_i32, %c0_i32_0 : i32, i32
  }
  func.func @transform_10(%arg0: i32) -> (i32, i32) {
    %c0_i32 = arith.constant 0 : i32
    %c0_i32_0 = arith.constant 0 : i32
    %c0_i32_1 = arith.constant 0 : i32
    return %c0_i32, %c0_i32_0 : i32, i32
  }
  func.func @transform_11(%arg0: i32) -> (i32, i32, i32) {
    %c0_i32 = arith.constant 0 : i32
    %c0_i32_0 = arith.constant 0 : i32
    %c0_i32_1 = arith.constant 0 : i32
    %c0_i32_2 = arith.constant 0 : i32
    return %c0_i32, %c0_i32_0, %c0_i32_1 : i32, i32, i32
  }
}

</mosaic_0001>

<llo_original>
// kernel: tpu_custom_call.1
$region0: #{tpu_custom_call.1}
  #allocation0 [shape = 'u32[]', space=smem, size = 0x4, offset = 0x4, fixed_abs, tag = 'smem constant byte address 0x4 - core index']
  #allocation1 [shape = 'u32[72,128]{1,0:T(1,128)}', space=vmem, size = 0x9000, scoped, tag = 'internal scratch']
  %s0 = inlined_call_operand.hbm [shape: f32[2,8,16], index: 0, kind: input, shape index: {}]
  %s1 = inlined_call_operand.vmem [shape: f32[2,32], index: 1, kind: input, shape index: {}]
  %s2 = inlined_call_operand.vmem [shape: s32[2,1], index: 2, kind: input, shape index: {}]
  %s3 = inlined_call_operand.hbm [shape: f32[32,32], index: 3, kind: input, shape index: {}]
  %s4 = inlined_call_operand.vmem [shape: f32[1,32], index: 4, kind: input, shape index: {}]
  %s5 = inlined_call_operand.hbm [shape: f32[16,32], index: 5, kind: input, shape index: {}]
  %s6 = inlined_call_operand.hbm [shape: f32[16,16], index: 6, kind: input, shape index: {}]
  %s7 = inlined_call_operand.vmem [shape: f32[1,32], index: 7, kind: input, shape index: {}]
  %s8 = inlined_call_operand.vmem [shape: f32[2], index: 8, kind: input, shape index: {}]
  %s9 = inlined_call_operand.hbm [shape: f32[16,16], index: 9, kind: input, shape index: {}]
  %s10 = inlined_call_operand.hbm [shape: f32[2,16], index: 10, kind: output, shape index: {0}]
  %s11 = inlined_call_operand.hbm [shape: f32[2,2,8], index: 11, kind: output, shape index: {1}]
  %12 = xla_tuple %s10, %s11
  %s13 = sld [smem:[#allocation0]]
  $region82: #{tpu_custom_call.1} parent=0
    _
  %s15 = ssub.s32 1, %s13
  %s16 = scalar_select 0, %s15, %s13
  $region1: #{tpu_custom_call.1} parent=0
    #allocation2 [shape = 'u8[8192]{0}', space=vmem, size = 0x2000, scoped, tag = 'input window, operand 0, single buffered']
    #allocation3 [shape = 's32[1]{0}', space=sflag, size = 0x4, scoped, tag = 'scoped memory for tpu_custom_call.1']
    #allocation4 [shape = 's32[1]{0}', space=sflag, size = 0x4, scoped, tag = 'scoped memory for tpu_custom_call.1']
    #allocation5 [shape = 's32[1]{0}', space=sflag, size = 0x4, scoped, tag = 'scoped memory for tpu_custom_call.1']
    #allocation6 [shape = 'u8[16384]{0}', space=vmem, size = 0x4000, scoped, tag = 'input window, operand 3, single buffered']
    #allocation7 [shape = 's32[1]{0}', space=sflag, size = 0x4, scoped, tag = 'scoped memory for tpu_custom_call.1']
    #allocation8 [shape = 'u8[8192]{0}', space=vmem, size = 0x2000, scoped, tag = 'input window, operand 5, single buffered']
    #allocation9 [shape = 'u8[8192]{0}', space=vmem, size = 0x2000, scoped, tag = 'input window, operand 6, single buffered']
    #allocation10 [shape = 's32[1]{0}', space=sflag, size = 0x4, scoped, tag = 'scoped memory for tpu_custom_call.1']
    #allocation11 [shape = 'u8[512]{0}', space=smem, size = 0x200, scoped, tag = 'input window, operand 8, single buffered']
    #allocation12 [shape = 'u8[8192]{0}', space=vmem, size = 0x2000, scoped, tag = 'input window, operand 9, single buffered']
    #allocation13 [shape = 'u8[1024]{0}', space=vmem, size = 0x400, scoped, tag = 'output window, operand 0, single buffered']
    #allocation14 [shape = 'u8[2048]{0}', space=vmem, size = 0x800, scoped, tag = 'output window, operand 1, single buffered']
    #allocation15 [shape = 's32[1]{0}', space=sflag, size = 0x4, scoped, tag = 'scoped memory for tpu_custom_call.1']
    %17 = vsyncpa [#allocation3], 0
    %18 = vsyncpa [#allocation7], 0
    %19 = vsyncpa [#allocation10], 0
    %20 = vsyncpa [#allocation5], 0
    %21 = vsyncpa [#allocation4], 0
    %22 = vsyncpa [#allocation15], 0
    // Predicated region
    $region2: #{tpu_custom_call.1} parent=1 // pred_check
      _
    $region3: #{tpu_custom_call.1} parent=1 // pred_check_branch
      %24 = sbr.rel (0) target = $region5
    $region4: #{tpu_custom_call.1} parent=1 // pred_region
      %26 = vsyncadd [#allocation3], 0
      %s27 = sshll.u32 %s0, 4
      %s28 = int_to_ptr.hbm [resolvable:$true] %s27
      %s29 = sshll.u32 [#allocation2], 4
      %s30 = int_to_ptr.vmem [resolvable:$true] %s29
      %35 = dma.hbm_to_vmem [thread:$0]  %s28, 256, %s30, [#allocation3], 128, 128, 8
    $region5: #{tpu_custom_call.1} parent=1 // pred_fallthru
      _
    // Predicated region
    $region6: #{tpu_custom_call.1} parent=1 // pred_check
      _
    $region7: #{tpu_custom_call.1} parent=1 // pred_check_branch
      %37 = sbr.rel (0) target = $region9
    $region8: #{tpu_custom_call.1} parent=1 // pred_region
      _
    $region9: #{tpu_custom_call.1} parent=1 // pred_fallthru
      _
    // Predicated region
    $region10: #{tpu_custom_call.1} parent=1 // pred_check
      _
    $region11: #{tpu_custom_call.1} parent=1 // pred_check_branch
      %39 = sbr.rel (0) target = $region13
    $region12: #{tpu_custom_call.1} parent=1 // pred_region
      _
    $region13: #{tpu_custom_call.1} parent=1 // pred_fallthru
      _
    // Predicated region
    $region14: #{tpu_custom_call.1} parent=1 // pred_check
      _
    $region15: #{tpu_custom_call.1} parent=1 // pred_check_branch
      %41 = sbr.rel (0) target = $region17
    $region16: #{tpu_custom_call.1} parent=1 // pred_region
      %43 = vsyncadd [#allocation7], 0
      %s44 = sshll.u32 %s3, 4
      %s45 = int_to_ptr.hbm [resolvable:$true] %s44
      %s46 = sshll.u32 [#allocation6], 4
      %s47 = int_to_ptr.vmem [resolvable:$true] %s46
      %52 = dma.hbm_to_vmem [thread:$0]  %s45, 512, %s47, [#allocation7], 128, 128, 8
    $region17: #{tpu_custom_call.1} parent=1 // pred_fallthru
      _
    // Predicated region
    $region18: #{tpu_custom_call.1} parent=1 // pred_check
      _
    $region19: #{tpu_custom_call.1} parent=1 // pred_check_branch
      %54 = sbr.rel (0) target = $region21
    $region20: #{tpu_custom_call.1} parent=1 // pred_region
      _
    $region21: #{tpu_custom_call.1} parent=1 // pred_fallthru
      _
    // Predicated region
    $region22: #{tpu_custom_call.1} parent=1 // pred_check
      _
    $region23: #{tpu_custom_call.1} parent=1 // pred_check_branch
      %56 = sbr.rel (0) target = $region25
    $region24: #{tpu_custom_call.1} parent=1 // pred_region
      %58 = vsyncadd [#allocation7], 0
      %s59 = sshll.u32 %s5, 4
      %s60 = int_to_ptr.hbm [resolvable:$true] %s59
      %s61 = sshll.u32 [#allocation8], 4
      %s62 = int_to_ptr.vmem [resolvable:$true] %s61
      %67 = dma.hbm_to_vmem [thread:$0]  %s60, 256, %s62, [#allocation7], 128, 128, 8
    $region25: #{tpu_custom_call.1} parent=1 // pred_fallthru
      _
    // Predicated region
    $region26: #{tpu_custom_call.1} parent=1 // pred_check
      _
    $region27: #{tpu_custom_call.1} parent=1 // pred_check_branch
      %69 = sbr.rel (0) target = $region29
    $region28: #{tpu_custom_call.1} parent=1 // pred_region
      %71 = vsyncadd [#allocation10], 0
      %s72 = sshll.u32 %s6, 4
      %s73 = int_to_ptr.hbm [resolvable:$true] %s72
      %s74 = sshll.u32 [#allocation9], 4
      %s75 = int_to_ptr.vmem [resolvable:$true] %s74
      %80 = dma.hbm_to_vmem [thread:$0]  %s73, 256, %s75, [#allocation10], 128, 128, 8
    $region29: #{tpu_custom_call.1} parent=1 // pred_fallthru
      _
    // Predicated region
    $region30: #{tpu_custom_call.1} parent=1 // pred_check
      _
    $region31: #{tpu_custom_call.1} parent=1 // pred_check_branch
      %82 = sbr.rel (0) target = $region33
    $region32: #{tpu_custom_call.1} parent=1 // pred_region
      _
    $region33: #{tpu_custom_call.1} parent=1 // pred_fallthru
      _
    // Predicated region
    $region34: #{tpu_custom_call.1} parent=1 // pred_check
      _
    $region35: #{tpu_custom_call.1} parent=1 // pred_check_branch
      %84 = sbr.rel (0) target = $region37
    $region36: #{tpu_custom_call.1} parent=1 // pred_region
      %86 = vsyncadd [#allocation5], 0
      %s88 = sshll.u32 %s8, 4
      %s89 = int_to_ptr.vmem [resolvable:$true] %s88
      %91 = dma.vmem_to_smem %s89, 16, [#allocation11], [#allocation5]
    $region37: #{tpu_custom_call.1} parent=1 // pred_fallthru
      _
    // Predicated region
    $region38: #{tpu_custom_call.1} parent=1 // pred_check
      _
    $region39: #{tpu_custom_call.1} parent=1 // pred_check_branch
      %93 = sbr.rel (0) target = $region41
    $region40: #{tpu_custom_call.1} parent=1 // pred_region
      %95 = vsyncadd [#allocation10], 0
      %s96 = sshll.u32 %s9, 4
      %s97 = int_to_ptr.hbm [resolvable:$true] %s96
      %s98 = sshll.u32 [#allocation12], 4
      %s99 = int_to_ptr.vmem [resolvable:$true] %s98
      %104 = dma.hbm_to_vmem [thread:$0]  %s97, 256, %s99, [#allocation10], 128, 128, 8
    $region41: #{tpu_custom_call.1} parent=1 // pred_fallthru
      _
    // Predicated region
    $region42: #{tpu_custom_call.1} parent=1 // pred_check
      _
    $region43: #{tpu_custom_call.1} parent=1 // pred_check_branch
      %106 = sbr.rel (0) target = $region45
    $region44: #{tpu_custom_call.1} parent=1 // pred_region
      %108 = dma.done [#allocation3], 256
    $region45: #{tpu_custom_call.1} parent=1 // pred_fallthru
      _
    // Predicated region
    $region46: #{tpu_custom_call.1} parent=1 // pred_check
      _
    $region47: #{tpu_custom_call.1} parent=1 // pred_check_branch
      %110 = sbr.rel (0) target = $region49
    $region48: #{tpu_custom_call.1} parent=1 // pred_region
      %112 = dma.done [#allocation7], 512
    $region49: #{tpu_custom_call.1} parent=1 // pred_fallthru
      _
    // Predicated region
    $region50: #{tpu_custom_call.1} parent=1 // pred_check
      _
    $region51: #{tpu_custom_call.1} parent=1 // pred_check_branch
      %114 = sbr.rel (0) target = $region53
    $region52: #{tpu_custom_call.1} parent=1 // pred_region
      %116 = dma.done [#allocation7], 256
    $region53: #{tpu_custom_call.1} parent=1 // pred_fallthru
      _
    // Predicated region
    $region54: #{tpu_custom_call.1} parent=1 // pred_check
      _
    $region55: #{tpu_custom_call.1} parent=1 // pred_check_branch
      %118 = sbr.rel (0) target = $region57
    $region56: #{tpu_custom_call.1} parent=1 // pred_region
      %120 = dma.done [#allocation10], 256
    $region57: #{tpu_custom_call.1} parent=1 // pred_fallthru
      _
    // Predicated region
    $region58: #{tpu_custom_call.1} parent=1 // pred_check
      _
    $region59: #{tpu_custom_call.1} parent=1 // pred_check_branch
      %122 = sbr.rel (0) target = $region61
    $region60: #{tpu_custom_call.1} parent=1 // pred_region
      %124 = dma.done [#allocation5], 16
    $region61: #{tpu_custom_call.1} parent=1 // pred_fallthru
      _
    // Predicated region
    $region62: #{tpu_custom_call.1} parent=1 // pred_check
      _
    $region63: #{tpu_custom_call.1} parent=1 // pred_check_branch
      %126 = sbr.rel (0) target = $region65
    $region64: #{tpu_custom_call.1} parent=1 // pred_region
      %128 = dma.done [#allocation10], 256
    $region65: #{tpu_custom_call.1} parent=1 // pred_fallthru
      _
    %129 = sfence
    %v130 = vld [vmem:[#allocation2] sm:$0xff]
    %v131 = vld [vmem:[#allocation2 + $0x8] sm:$0xff]
    %v132 = vld [vmem:[#allocation8] sm:$0xff]
    %v133 = vld [vmem:[#allocation8 + $0x8] sm:$0xff]
    %vm134 = vcmask 130048
    %v136 = vsel %vm134, %v130, 0
    %v139 = vsel %vm134, %v131, 0
    %141 = vmatpush.msra.mxu0 0.0
    %142 = vmatpush.msra.mxu0 0.0
    %143 = vmatpush.msra.mxu0 0.0
    %144 = vmatpush.msra.mxu0 0.0
    %145 = vmatpush.msra.mxu0 0.0
    %146 = vmatpush.msra.mxu0 0.0
    %147 = vmatpush.msra.mxu0 0.0
    %148 = vmatpush.msra.mxu0 0.0
    %149 = vmatpush.msra.mxu0 0.0
    %150 = vmatpush.msra.mxu0 0.0
    %151 = vmatpush.msra.mxu0 0.0
    %152 = vmatpush.msra.mxu0 0.0
    %153 = vmatpush.msra.mxu0 0.0
    %154 = vmatpush.msra.mxu0 0.0
    %155 = vmatpush.msra.mxu0 %v133
    %156 = vmatpush.msra.mxu0 %v132
    %157 = vmatmul.f32.gmra.mxu0 %v136
    %v158 = vpop.f32.mrf.mxu0
    %v159 = vadd.f32 0.0, %v158
    %160 = vmatmul.f32.gmra.mxu0 %v139
    %v161 = vpop.f32.mrf.mxu0
    %v162 = vadd.f32 0.0, %v161
    %163 = vdwg.mxu0
    %v164 = vld [vmem:[#allocation9] sm:$0xff]
    %v165 = vld [vmem:[#allocation9 + $0x8] sm:$0xff]
    %166 = vmatpush.msra.mxu0 0.0
    %167 = vmatpush.msra.mxu0 0.0
    %168 = vmatpush.msra.mxu0 0.0
    %169 = vmatpush.msra.mxu0 0.0
    %170 = vmatpush.msra.mxu0 0.0
    %171 = vmatpush.msra.mxu0 0.0
    %172 = vmatpush.msra.mxu0 0.0
    %173 = vmatpush.msra.mxu0 0.0
    %174 = vmatpush.msra.mxu0 0.0
    %175 = vmatpush.msra.mxu0 0.0
    %176 = vmatpush.msra.mxu0 0.0
    %177 = vmatpush.msra.mxu0 0.0
    %178 = vmatpush.msra.mxu0 0.0
    %179 = vmatpush.msra.mxu0 0.0
    %180 = vmatpush.msra.mxu0 %v165
    %181 = vmatpush.msra.mxu0 %v164
    %182 = vmatmul.f32.gmra.mxu0 %v136
    %v183 = vpop.f32.mrf.mxu0
    %v184 = vadd.f32 0.0, %v183
    %185 = vmatmul.f32.gmra.mxu0 %v139
    %v186 = vpop.f32.mrf.mxu0
    %v187 = vadd.f32 0.0, %v186
    %188 = vdwg.mxu0
    %v189 = vld [vmem:[%s1] sm:$0x3]
    %v190 = vld [vmem:[#allocation6] sm:$0xff]
    %v191 = vld [vmem:[#allocation6 + $0x8] sm:$0xff]
    %v192 = vld [vmem:[#allocation6 + $0x10] sm:$0xff]
    %v193 = vld [vmem:[#allocation6 + $0x18] sm:$0xff]
    %v194 = vld [vmem:[%s4] sm:$0x1]
    %v196 = vperm.slane %v194, 0
    %vm198 = vcmask 261120
    %v200 = vsel %vm198, %v189, 0
    %202 = vmatpush.msra.mxu0 0.0
    %203 = vmatpush.msra.mxu0 0.0
    %204 = vmatpush.msra.mxu0 0.0
    %205 = vmatpush.msra.mxu0 0.0
    %206 = vmatpush.msra.mxu0 0.0
    %207 = vmatpush.msra.mxu0 0.0
    %208 = vmatpush.msra.mxu0 0.0
    %209 = vmatpush.msra.mxu0 0.0
    %210 = vmatpush.msra.mxu0 0.0
    %211 = vmatpush.msra.mxu0 0.0
    %212 = vmatpush.msra.mxu0 0.0
    %213 = vmatpush.msra.mxu0 0.0
    %214 = vmatpush.msra.mxu0 %v193
    %215 = vmatpush.msra.mxu0 %v192
    %216 = vmatpush.msra.mxu0 %v191
    %217 = vmatpush.msra.mxu0 %v190
    %218 = vmatmul.f32.gmra.mxu0 %v200
    %v219 = vpop.f32.mrf.mxu0
    %v220 = vadd.f32 %v196, %v219
    %221 = vdwg.mxu0
    %v223 = vrot.slane %v220, 1
    %v224 = vperm.slane %v220, 0
    %v225 = vperm.slane %v223, 0
    %v228 = vadd.f32 %v159, %v224
    %v229 = vadd.f32 %v162, %v225
    %v230 = vtanh.pop %v228
    %v231 = vtanh.pop %v229
    %v232 = vld [vmem:[%s7] sm:$0x1]
    %v234 = vperm.slane %v232, 0
    %v236 = vmul.f32 %v230, %v234
    %v237 = vmul.f32 %v231, %v234
    %v238 = vlaneseq
    %v239 = vand.u32 %v238, 127
    %v240 = vld [vmem:[%s2] sm:$0x3]
    %241 = vset.pattern.permute.xlu0 0
    %242 = vperm.xlu0 %241, %v240
    %v243 = vpop.permute.xlu0 %242
    %vm244 = vcmp.ge.s32.totalorder %v239, %v243
    %v245 = vsel %vm134, %v236, 0.0
    %246 = vadd.xlane.f32.xlu0 %v245
    %v247 = vpop.xlane.xlu0 %246
    %v248 = vsel %vm134, %v237, 0.0
    %249 = vadd.xlane.f32.xlu0 %v248
    %v250 = vpop.xlane.xlu0 %249
    %s251 = sld [smem:[#allocation11]]
    %v252 = vstv %s251
    %v253 = vadd.f32 %v247, %v252
    %v254 = vadd.f32 %v250, %v252
    %v257 = vperm.slane %v253, %v239
    %v258 = vperm.slane %v254, %v239
    %vm259 = vcmask 1041409
    %v260 = vsel %vm259, %v258, %v257
    %v262 = vsel %vm244, -1e+30, %v260
    %v263 = vmul.f32 %v262, 0.25
    %vm264 = vcmask 58368
    %v265 = vsel %vm264, %v263, -inf
    %266 = vmax.xlane.f32.xlu0 %v265
    %v267 = vpop.xlane.xlu0 %266
    %v268 = vsub.f32 %v263, %v267
    %v269 = vmul.f32 %v268, 1.442695
    %v270 = vpow.pop %v269
    %v271 = vsel %vm264, %v270, 0.0
    %272 = vadd.xlane.f32.xlu0 %v271
    %v273 = vpop.xlane.xlu0 %272
    %v274 = vrcp.pop %v273
    %v275 = vmul.f32 %v270, %v274
    %276 = vst.msk [vmem:[#allocation14] sm:$0x3] %vm264, %v275
    %v277 = vperm.slane %v275, 0
    %v278 = vlaneseq
    %v279 = vshrl.u32 %v278, 7
    %281 = vset.pattern.permute.xlu0 %v279
    %282 = vperm.xlu0 %281, %v277
    %v283 = vpop.permute.xlu0 %282
    %v284 = vperm.slane %v275, 1
    %v285 = vlaneseq
    %v286 = vshrl.u32 %v285, 7
    %288 = vset.pattern.permute.xlu0 %v286
    %289 = vperm.xlu0 %288, %v284
    %v290 = vpop.permute.xlu0 %289
    %v291 = vmul.f32 %v184, %v283
    %v292 = vmul.f32 %v187, %v290
    %vm293 = vcmask 64512
    %v294 = vsel %vm293, %v291, 0.0
    %v295 = vrot.slane %v294, 4
    %v296 = vadd.f32 %v294, %v295
    %v297 = vrot.slane %v296, 2
    %v298 = vadd.f32 %v296, %v297
    %v299 = vrot.slane %v298, 1
    %v300 = vadd.f32 %v298, %v299
    %v301 = vsel %vm293, %v292, 0.0
    %v302 = vrot.slane %v301, 4
    %v303 = vadd.f32 %v301, %v302
    %v304 = vrot.slane %v303, 2
    %v305 = vadd.f32 %v303, %v304
    %v306 = vrot.slane %v305, 1
    %v307 = vadd.f32 %v305, %v306
    %310 = vrot.lane.b32.xlu0 %v236, 112
    %v311 = vpop.permute.xlu0 %310
    %312 = vrot.lane.b32.xlu0 %v237, 112
    %v313 = vpop.permute.xlu0 %312
    %v316 = vsel %vm134, %v311, 0.0
    %317 = vadd.xlane.f32.xlu0 %v316
    %v318 = vpop.xlane.xlu0 %317
    %v319 = vsel %vm134, %v313, 0.0
    %320 = vadd.xlane.f32.xlu0 %v319
    %v321 = vpop.xlane.xlu0 %320
    %s322 = sld [smem:[#allocation11 + $0x1]]
    %v323 = vstv %s322
    %v324 = vadd.f32 %v318, %v323
    %v325 = vadd.f32 %v321, %v323
    %v328 = vperm.slane %v324, %v239
    %v329 = vperm.slane %v325, %v239
    %v330 = vsel %vm259, %v329, %v328
    %v332 = vsel %vm244, -1e+30, %v330
    %v333 = vmul.f32 %v332, 0.25
    %v334 = vsel %vm264, %v333, -inf
    %335 = vmax.xlane.f32.xlu0 %v334
    %v336 = vpop.xlane.xlu0 %335
    %v337 = vsub.f32 %v333, %v336
    %v338 = vmul.f32 %v337, 1.442695
    %v339 = vpow.pop %v338
    %v340 = vsel %vm264, %v339, 0.0
    %341 = vadd.xlane.f32.xlu0 %v340
    %v342 = vpop.xlane.xlu0 %341
    %v343 = vrcp.pop %v342
    %v344 = vmul.f32 %v339, %v343
    %s345 = scalar_lea.vmem [#allocation14], 2
    %346 = vst.msk [vmem:[%s345] sm:$0x3] %vm264, %v344
    %v347 = vperm.slane %v344, 0
    %v348 = vlaneseq
    %v349 = vshrl.u32 %v348, 7
    %351 = vset.pattern.permute.xlu0 %v349
    %352 = vperm.xlu0 %351, %v347
    %v353 = vpop.permute.xlu0 %352
    %v354 = vperm.slane %v344, 1
    %v355 = vlaneseq
    %v356 = vshrl.u32 %v355, 7
    %358 = vset.pattern.permute.xlu0 %v356
    %359 = vperm.xlu0 %358, %v354
    %v360 = vpop.permute.xlu0 %359
    %v361 = vmul.f32 %v184, %v353
    %v362 = vmul.f32 %v187, %v360
    %vm363 = vcmask 130112
    %v364 = vsel %vm363, %v361, 0.0
    %v365 = vrot.slane %v364, 4
    %v366 = vadd.f32 %v364, %v365
    %v367 = vrot.slane %v366, 2
    %v368 = vadd.f32 %v366, %v367
    %v369 = vrot.slane %v368, 1
    %v370 = vadd.f32 %v368, %v369
    %v371 = vsel %vm363, %v362, 0.0
    %v372 = vrot.slane %v371, 4
    %v373 = vadd.f32 %v371, %v372
    %v374 = vrot.slane %v373, 2
    %v375 = vadd.f32 %v373, %v374
    %v376 = vrot.slane %v375, 1
    %v377 = vadd.f32 %v375, %v376
    %v380 = vsel %vm259, %v307, %v300
    %v384 = vsel %vm259, %v377, %v370
    %v386 = vsel %vm293, %v380, %v384
    %v387 = vld [vmem:[#allocation12] sm:$0xff]
    %v388 = vld [vmem:[#allocation12 + $0x8] sm:$0xff]
    %v390 = vsel %vm134, %v386, 0
    %392 = vmatpush.msra.mxu0 0.0
    %393 = vmatpush.msra.mxu0 0.0
    %394 = vmatpush.msra.mxu0 0.0
    %395 = vmatpush.msra.mxu0 0.0
    %396 = vmatpush.msra.mxu0 0.0
    %397 = vmatpush.msra.mxu0 0.0
    %398 = vmatpush.msra.mxu0 0.0
    %399 = vmatpush.msra.mxu0 0.0
    %400 = vmatpush.msra.mxu0 0.0
    %401 = vmatpush.msra.mxu0 0.0
    %402 = vmatpush.msra.mxu0 0.0
    %403 = vmatpush.msra.mxu0 0.0
    %404 = vmatpush.msra.mxu0 0.0
    %405 = vmatpush.msra.mxu0 0.0
    %406 = vmatpush.msra.mxu0 %v388
    %407 = vmatpush.msra.mxu0 %v387
    %408 = vmatmul.f32.gmra.mxu0 %v390
    %v409 = vpop.f32.mrf.mxu0
    %v410 = vadd.f32 0.0, %v409
    %411 = vdwg.mxu0
    %vm412 = vcmask 123904
    %413 = vst.msk [vmem:[#allocation13] sm:$0x3] %vm412, %v410
    // Predicated region
    $region66: #{tpu_custom_call.1} parent=1 // pred_check
      _
    $region67: #{tpu_custom_call.1} parent=1 // pred_check_branch
      %415 = sbr.rel (0) target = $region69
    $region68: #{tpu_custom_call.1} parent=1 // pred_region
      %417 = vsyncadd [#allocation4], 0
      %s419 = sshll.u32 [#allocation13], 4
      %s420 = int_to_ptr.vmem [resolvable:$true] %s419
      %s421 = sshll.u32 %s10, 4
      %s422 = int_to_ptr.hbm [resolvable:$true] %s421
      %424 = dma.vmem_to_hbm [thread:$0]  %s420, 32, %s422, [#allocation4]
    $region69: #{tpu_custom_call.1} parent=1 // pred_fallthru
      _
    // Predicated region
    $region70: #{tpu_custom_call.1} parent=1 // pred_check
      _
    $region71: #{tpu_custom_call.1} parent=1 // pred_check_branch
      %426 = sbr.rel (0) target = $region73
    $region72: #{tpu_custom_call.1} parent=1 // pred_region
      %428 = vsyncadd [#allocation15], 0
      %s429 = sshll.u32 [#allocation14], 4
      %s430 = int_to_ptr.vmem [resolvable:$true] %s429
      %s431 = sshll.u32 %s11, 4
      %s432 = int_to_ptr.hbm [resolvable:$true] %s431
      %437 = dma.vmem_to_hbm [thread:$0]  %s430, 64, %s432, [#allocation15], 32, 32, 2
    $region73: #{tpu_custom_call.1} parent=1 // pred_fallthru
      _
    // Predicated region
    $region74: #{tpu_custom_call.1} parent=1 // pred_check
      _
    $region75: #{tpu_custom_call.1} parent=1 // pred_check_branch
      %439 = sbr.rel (0) target = $region77
    $region76: #{tpu_custom_call.1} parent=1 // pred_region
      %441 = dma.done [#allocation4], 32
    $region77: #{tpu_custom_call.1} parent=1 // pred_fallthru
      _
    // Predicated region
    $region78: #{tpu_custom_call.1} parent=1 // pred_check
      _
    $region79: #{tpu_custom_call.1} parent=1 // pred_check_branch
      %443 = sbr.rel (0) target = $region81
    $region80: #{tpu_custom_call.1} parent=1 // pred_region
      %445 = dma.done [#allocation15], 64
    $region81: #{tpu_custom_call.1} parent=1 // pred_fallthru
      _
    %446 = vsyncpa [#allocation3], 1
    %447 = vsyncpa [#allocation7], 1
    %448 = vsyncpa [#allocation10], 1
    %449 = vsyncpa [#allocation4], 1
    %450 = vsyncpa [#allocation15], 1
    %451 = vsyncpa [#allocation5], 1

</llo_original>
